<compile_context>
chip_gen: v6e
topology: v6e:2x2x1
jax: 0.10.0
libtpu: 0.0.40
codegen_flags: <defaults>
</compile_context>

<pallas_src>
import functools

import jax
import jax.numpy as jnp
from jax.experimental import pallas as pl
from jax.experimental.pallas import tpu as pltpu


def _round_up(x, m):
    return ((x + m - 1) // m) * m


# ----------------------------------------------------------------------------
# Fused-gather kernel: entity + relation tables are VMEM-resident; each grid
# step receives only six (TB, 1) int32 index columns and emits a partial sum.
# ----------------------------------------------------------------------------
def _transe_fused_kernel(ph_ref, pt_ref, nh_ref, nt_ref, pr_ref, nr_ref,
                         ent_ref, rel_ref, out_ref, *, margin, batch):
    i = pl.program_id(0)
    tb = ph_ref.shape[0]

    # Resident tables (constant index_map -> fetched once); upcast to f32 so
    # all VPU math is f32 (required on v5e, harmless elsewhere).
    ent = ent_ref[...].astype(jnp.float32)          # (E, Dp)
    rel = rel_ref[...].astype(jnp.float32)          # (R, Dp)

    ent_iota = jax.lax.broadcasted_iota(jnp.int32, (tb, ent.shape[0]), 1)
    rel_iota = jax.lax.broadcasted_iota(jnp.int32, (tb, rel.shape[0]), 1)

    # One-hot MXU gathers.  The MXU is otherwise idle in this HBM-bound kernel,
    # so these are essentially free.  NOTE: an out-of-range index yields an
    # all-zero one-hot (zero embedding) instead of raising, unlike PyTorch.
    def egather(idx_ref):
        oh = (idx_ref[...] == ent_iota).astype(jnp.float32)      # (TB, E)
        return jnp.dot(oh, ent, preferred_element_type=jnp.float32)

    def rgather(idx_ref):
        oh = (idx_ref[...] == rel_iota).astype(jnp.float32)      # (TB, R)
        return jnp.dot(oh, rel, preferred_element_type=jnp.float32)

    pos_diff = egather(ph_ref) + rgather(pr_ref) - egather(pt_ref)   # (TB, Dp)
    neg_diff = egather(nh_ref) + rgather(nr_ref) - egather(nt_ref)

    # Row-wise L2 norms, kept 2-D; zero-padded embedding columns are harmless.
    d_pos = jnp.sqrt(jnp.sum(pos_diff * pos_diff, axis=-1, keepdims=True))
    d_neg = jnp.sqrt(jnp.sum(neg_diff * neg_diff, axis=-1, keepdims=True))
    hinge = jnp.maximum(margin + d_pos - d_neg, 0.0)                 # (TB, 1)

    # Mask the zero-padded batch rows of the last tile.
    row = i * tb + jax.lax.broadcasted_iota(jnp.int32, (tb, 1), 0)
    hinge = jnp.where(row < batch, hinge, 0.0)

    out_ref[...] = jnp.sum(hinge, axis=0, keepdims=True)[None]       # (1,1,1)


def transe_loss_fused(pos_h_idx, pos_t_idx, neg_h_idx, neg_t_idx,
                      pos_r_idx, neg_r_idx, ent_table, rel_table, margin,
                      *, block_rows=4096):
    """Indices: [B] int.  ent_table: [E, Dp], rel_table: [R, Dp] (Dp % 128 == 0).
    Returns shape (1,)."""
    B = pos_h_idx.shape[0]
    E, Dp = ent_table.shape
    R = rel_table.shape[0]
    itemsize = jnp.dtype(ent_table.dtype).itemsize

    # Tile height: sublane aligned, >= 2 tiles whenever B > 8 (v7x megacore),
    # and small enough that the in-kernel f32 intermediates (one-hots + six
    # gathered (TB, Dp) rows + diffs) stay well inside scoped VMEM.
    per_row_bytes = (8 * Dp + 4 * E + 2 * R) * 4 + 6 * 4
    tb_vmem_cap = max(8, (24 << 20) // per_row_bytes)
    tb = min(int(block_rows), tb_vmem_cap,
             _round_up(pl.cdiv(B, 2), 8), _round_up(B, 8))
    tb = max(8, _round_up(tb, 8))
    b_pad = _round_up(B, tb)
    num_tiles = b_pad // tb

    # Only the 4-byte index columns are padded (free) -- never a [B, Dp] stream.
    def prep(idx):
        idx = idx.reshape(B, 1).astype(jnp.int32)
        if b_pad != B:
            idx = jnp.pad(idx, ((0, b_pad - B), (0, 0)))
        return idx

    ph, pt, nh, nt, pr, nr = (prep(x) for x in (
        pos_h_idx, pos_t_idx, neg_h_idx, neg_t_idx, pos_r_idx, neg_r_idx))

    idx_spec = pl.BlockSpec((tb, 1), lambda i: (i, 0))
    ent_spec = pl.BlockSpec((E, Dp), lambda i: (0, 0))   # resident, fetched once
    rel_spec = pl.BlockSpec((R, Dp), lambda i: (0, 0))   # resident, fetched once

    bytes_accessed = int((E + R) * Dp * itemsize + 6 * b_pad * 4 + num_tiles * 4)
    flops = int(2 * b_pad * Dp * (4 * E + 2 * R) + 12 * b_pad * Dp)
    cost = pl.CostEstimate(flops=flops, transcendentals=2 * b_pad,
                           bytes_accessed=bytes_accessed)

    vmem_est = (2 * 6 * tb * 4 + 2 * (E + R) * Dp * itemsize + tb * per_row_bytes)
    vmem_limit = int(min(max(2 * vmem_est, 32 << 20), 64 << 20))

    # NOTE: margin is baked in (recompile if it changes).
    partials = pl.pallas_call(
        functools.partial(_transe_fused_kernel, margin=float(margin), batch=B),
        out_shape=jax.ShapeDtypeStruct((num_tiles, 1, 1), jnp.float32),
        grid=(num_tiles,),
        in_specs=[idx_spec] * 6 + [ent_spec, rel_spec],
        out_specs=pl.BlockSpec((1, 1, 1), lambda i: (i, 0, 0)),
        compiler_params=pltpu.CompilerParams(
            dimension_semantics=("parallel",),
            vmem_limit_bytes=vmem_limit),
        cost_estimate=cost,
    )(ph, pt, nh, nt, pr, nr, ent_table, rel_table)

    return jnp.sum(partials).reshape((1,))


# ----------------------------------------------------------------------------
# Streaming fallback for entity tables too large to keep VMEM-resident:
# the entity gather happens in XLA (on already-padded index vectors), the
# relation gather stays fused in-kernel.
# ----------------------------------------------------------------------------
def _transe_stream_kernel(pr_ref, nr_ref, ph_ref, pt_ref, nh_ref, nt_ref,
                          rel_ref, out_ref, *, margin, batch):
    i = pl.program_id(0)
    tb = ph_ref.shape[0]

    rel = rel_ref[...].astype(jnp.float32)
    rel_iota = jax.lax.broadcasted_iota(jnp.int32, (tb, rel.shape[0]), 1)
    pos_r = jnp.dot((pr_ref[...] == rel_iota).astype(jnp.float32), rel,
                    preferred_element_type=jnp.float32)
    neg_r = jnp.dot((nr_ref[...] == rel_iota).astype(jnp.float32), rel,
                    preferred_element_type=jnp.float32)

    pos_diff = ph_ref[...].astype(jnp.float32) + pos_r - pt_ref[...].astype(jnp.float32)
    neg_diff = nh_ref[...].astype(jnp.float32) + neg_r - nt_ref[...].astype(jnp.float32)

    d_pos = jnp.sqrt(jnp.sum(pos_diff * pos_diff, axis=-1, keepdims=True))
    d_neg = jnp.sqrt(jnp.sum(neg_diff * neg_diff, axis=-1, keepdims=True))
    hinge = jnp.maximum(margin + d_pos - d_neg, 0.0)

    row = i * tb + jax.lax.broadcasted_iota(jnp.int32, (tb, 1), 0)
    out_ref[...] = jnp.sum(jnp.where(row < batch, hinge, 0.0),
                           axis=0, keepdims=True)[None]


def transe_loss_streamed(pos_h_idx, pos_t_idx, neg_h_idx, neg_t_idx,
                         pos_r_idx, neg_r_idx, ent_table, rel_table, margin,
                         *, block_rows=4096):
    B = pos_h_idx.shape[0]
    E, Dp = ent_table.shape
    R = rel_table.shape[0]
    itemsize = jnp.dtype(ent_table.dtype).itemsize

    per_row_bytes = 4 * Dp * itemsize * 2 + 6 * Dp * 4   # double-buffered + f32 work
    tb_vmem_cap = max(8, (24 << 20) // per_row_bytes)
    tb = min(int(block_rows), tb_vmem_cap,
             _round_up(pl.cdiv(B, 2), 8), _round_up(B, 8))
    tb = max(8, _round_up(tb, 8))
    b_pad = _round_up(B, tb)
    num_tiles = b_pad // tb

    def pad_idx(idx):
        idx = idx.reshape(B).astype(jnp.int32)
        if b_pad != B:
            idx = jnp.pad(idx, (0, b_pad - B))
        return idx

    ph_i, pt_i, nh_i, nt_i = (pad_idx(x) for x in
                              (pos_h_idx, pos_t_idx, neg_h_idx, neg_t_idx))
    pr = pad_idx(pos_r_idx).reshape(b_pad, 1)
    nr = pad_idx(neg_r_idx).reshape(b_pad, 1)

    # Gather AFTER padding the cheap index vectors: the gather itself produces
    # the padded [b_pad, Dp] streams, so no extra HBM copy just to add rows.
    # TODO(synk): replace this XLA gather with an in-kernel DMA gather
    # (memory_space=pl.ANY + per-chunk make_async_copy) for very large tables.
    ph, pt, nh, nt = (jnp.take(ent_table, i, axis=0)
                      for i in (ph_i, pt_i, nh_i, nt_i))

    row_spec = pl.BlockSpec((tb, Dp), lambda i: (i, 0))
    idx_spec = pl.BlockSpec((tb, 1), lambda i: (i, 0))
    rel_spec = pl.BlockSpec((R, Dp), lambda i: (0, 0))

    bytes_accessed = int(4 * b_pad * Dp * itemsize + R * Dp * itemsize
                         + 2 * b_pad * 4 + num_tiles * 4)
    flops = int(2 * b_pad * Dp * 2 * R + 12 * b_pad * Dp)
    cost = pl.CostEstimate(flops=flops, transcendentals=2 * b_pad,
                           bytes_accessed=bytes_accessed)
    vmem_limit = int(min(max(2 * tb * per_row_bytes, 32 << 20), 64 << 20))

    partials = pl.pallas_call(
        functools.partial(_transe_stream_kernel, margin=float(margin), batch=B),
        out_shape=jax.ShapeDtypeStruct((num_tiles, 1, 1), jnp.float32),
        grid=(num_tiles,),
        in_specs=[idx_spec, idx_spec, row_spec, row_spec, row_spec, row_spec,
                  rel_spec],
        out_specs=pl.BlockSpec((1, 1, 1), lambda i: (i, 0, 0)),
        compiler_params=pltpu.CompilerParams(
            dimension_semantics=("parallel",),
            vmem_limit_bytes=vmem_limit),
        cost_estimate=cost,
    )(pr, nr, ph, pt, nh, nt, rel_table)

    return jnp.sum(partials).reshape((1,))


# ----------------------------------------------------------------------------
# Module wrapper
# ----------------------------------------------------------------------------
class TransEJax:
    """Minimal JAX port of the TransE module (forward path only)."""

    def __init__(self, entities_cnt, relations_cnt, dim=100, margin=1.0, seed=0,
                 table_dtype=jnp.bfloat16):
        self.entities_cnt = entities_cnt
        self.relations_cnt = relations_cnt
        self.dim = dim
        self.dim_padded = _round_up(dim, 128)     # lane-dense embedding dim
        self.margin = margin

        key = jax.random.PRNGKey(seed)
        k_ent, k_rel = jax.random.split(key)
        emb_range = 6.0 / (float(dim) ** 0.5)

        # rel embeddings: uniform then row-wise L2 normalize (as in __init__)
        rel = jax.random.uniform(k_rel, (relations_cnt, dim), jnp.float32,
                                 minval=-emb_range, maxval=emb_range)
        rel = rel / jnp.linalg.norm(rel, ord=2, axis=1, keepdims=True)
        ent = jax.random.uniform(k_ent, (entities_cnt, dim), jnp.float32,
                                 minval=-emb_range, maxval=emb_range)

        # Zero-pad D to a multiple of 128 (L2 norm unchanged), store bf16:
        # halves HBM bytes; in-kernel math is always f32.
        pad = self.dim_padded - dim
        self.rel_embeddings = jnp.pad(rel, ((0, 0), (0, pad))).astype(table_dtype)
        self.ent_embeddings = jnp.pad(ent, ((0, 0), (0, pad))).astype(table_dtype)

        itemsize = jnp.dtype(table_dtype).itemsize
        self._fused_ok = (entities_cnt * self.dim_padded * itemsize <= (4 << 20)
                          and entities_cnt <= 4096 and relations_cnt <= 4096)

    def forward(self, t_batch, *, block_rows=4096, force_streaming=False):
        # t_batch: int32 [B, 2, 3]  ([:, 0, :] = true triplet, [:, 1, :] = corrupted)
        pos = t_batch[:, 0, :]
        neg = t_batch[:, 1, :]
        args = (pos[:, 0], pos[:, 2], neg[:, 0], neg[:, 2], pos[:, 1], neg[:, 1],
                self.ent_embeddings, self.rel_embeddings, self.margin)
        if self._fused_ok and not force_streaming:
            return transe_loss_fused(*args, block_rows=block_rows)
        return transe_loss_streamed(*args, block_rows=block_rows)


def _reference_forward(model, t_batch):
    """Pure-JAX reference matching the PyTorch loop semantics (f32 math on the
    same stored tables)."""
    ent = model.ent_embeddings.astype(jnp.float32)
    rel = model.rel_embeddings.astype(jnp.float32)
    pos = t_batch[:, 0, :]
    neg = t_batch[:, 1, :]
    d_pos = jnp.linalg.norm(ent[pos[:, 0]] + rel[pos[:, 1]] - ent[pos[:, 2]], axis=-1)
    d_neg = jnp.linalg.norm(ent[neg[:, 0]] + rel[neg[:, 1]] - ent[neg[:, 2]], axis=-1)
    return jnp.sum(jax.nn.relu(model.margin + d_pos - d_neg)).reshape((1,))


if __name__ == "__main__":
    entities_cnt = 50
    relations_cnt = 10
    dim = 32            # padded to 128 lanes inside the model
    batch = 24
    margin = 1.0

    model = TransEJax(entities_cnt, relations_cnt, dim=dim, margin=margin, seed=0)

    # Deterministic synthetic t_batch: [B, 2, 3] int32 indices.
    key = jax.random.PRNGKey(0)
    k_e, k_r = jax.random.split(key)
    ent_idx = jax.random.randint(k_e, (batch, 2, 2), 0, entities_cnt, jnp.int32)
    rel_idx = jax.random.randint(k_r, (batch, 2, 1), 0, relations_cnt, jnp.int32)
    # columns: [head, relation, tail]
    t_batch = jnp.concatenate(
        [ent_idx[:, :, 0:1], rel_idx, ent_idx[:, :, 1:2]], axis=-1)

    ref = _reference_forward(model, t_batch)

    # Fused-gather path: small-tile multi-step grid and default big-tile grid.
    for block_rows in (8, 4096):
        loss = jax.block_until_ready(model.forward(t_batch, block_rows=block_rows))
        assert loss.shape == (1,)
        assert jnp.allclose(loss, ref, rtol=1e-4, atol=1e-4), (block_rows, loss, ref)

    # Streaming fallback path (used for entity tables too large for VMEM).
    loss_s = jax.block_until_ready(
        model.forward(t_batch, block_rows=8, force_streaming=True))
    assert loss_s.shape == (1,)
    assert jnp.allclose(loss_s, ref, rtol=1e-4, atol=1e-4), (loss_s, ref)

    print("KERNEL_OK")
</pallas_src>

<mosaic_0001>
module attributes {stable_mosaic.version = 11 : i64} {
  func.func @_transe_fused_kernel(%arg0: i32, %arg1: memref<8x1xi32, #tpu.memory_space<vmem>>, %arg2: memref<8x1xi32, #tpu.memory_space<vmem>>, %arg3: memref<8x1xi32, #tpu.memory_space<vmem>>, %arg4: memref<8x1xi32, #tpu.memory_space<vmem>>, %arg5: memref<8x1xi32, #tpu.memory_space<vmem>>, %arg6: memref<8x1xi32, #tpu.memory_space<vmem>>, %arg7: memref<50x128xbf16, #tpu.memory_space<vmem>>, %arg8: memref<10x128xbf16, #tpu.memory_space<vmem>>, %arg9: memref<1x1x1xf32, #tpu.memory_space<vmem>>) attributes {dimension_semantics = [#tpu.dimension_semantics<parallel>], iteration_bounds = array<i64: 3>, scalar_prefetch = 0 : i64, scratch_operands = 0 : i64, tpu.core_type = #tpu.core_type<tc>, window_params = [{transform_indices = @transform_0, window_bounds = array<i64: 8, 1>}, {transform_indices = @transform_1, window_bounds = array<i64: 8, 1>}, {transform_indices = @transform_2, window_bounds = array<i64: 8, 1>}, {transform_indices = @transform_3, window_bounds = array<i64: 8, 1>}, {transform_indices = @transform_4, window_bounds = array<i64: 8, 1>}, {transform_indices = @transform_5, window_bounds = array<i64: 8, 1>}, {pipeline_mode = #tpu.pipeline_mode<synchronous>, transform_indices = @transform_6, window_bounds = array<i64: 50, 128>}, {pipeline_mode = #tpu.pipeline_mode<synchronous>, transform_indices = @transform_7, window_bounds = array<i64: 10, 128>}, {transform_indices = @transform_8, window_bounds = array<i64: 1, 1, 1>}]} {
    %c0 = arith.constant 0 : index
    %c0_0 = arith.constant 0 : index
    %0 = vector.load %arg7[%c0, %c0_0] : memref<50x128xbf16, #tpu.memory_space<vmem>>, vector<50x128xbf16>
    %1 = arith.extf %0 : vector<50x128xbf16> to vector<50x128xf32>
    %c0_1 = arith.constant 0 : index
    %c0_2 = arith.constant 0 : index
    %2 = vector.load %arg8[%c0_1, %c0_2] : memref<10x128xbf16, #tpu.memory_space<vmem>>, vector<10x128xbf16>
    %3 = arith.extf %2 : vector<10x128xbf16> to vector<10x128xf32>
    %4 = tpu.iota {dimensions = array<i32: 1>} : vector<8x50xi32>
    %5 = tpu.iota {dimensions = array<i32: 1>} : vector<8x10xi32>
    %c0_3 = arith.constant 0 : index
    %c0_4 = arith.constant 0 : index
    %6 = vector.load %arg1[%c0_3, %c0_4] : memref<8x1xi32, #tpu.memory_space<vmem>>, vector<8x1xi32>
    %7 = vector.broadcast %6 : vector<8x1xi32> to vector<8x50xi32>
    %8 = arith.cmpi eq, %7, %4 : vector<8x50xi32>
    %9 = arith.extui %8 : vector<8x50xi1> to vector<8x50xi32>
    %10 = arith.sitofp %9 : vector<8x50xi32> to vector<8x50xf32>
    %cst = arith.constant dense<0.000000e+00> : vector<8x128xf32>
    %11 = tpu.matmul %10, %1, %cst {dimension_numbers = #tpu.dot_dimension_numbers<[1], [0], [0], [1], [0, 0, 1, 1], [], []>} : vector<8x50xf32>, vector<50x128xf32>, vector<8x128xf32> -> vector<8x128xf32>
    %c0_5 = arith.constant 0 : index
    %c0_6 = arith.constant 0 : index
    %12 = vector.load %arg5[%c0_5, %c0_6] : memref<8x1xi32, #tpu.memory_space<vmem>>, vector<8x1xi32>
    %13 = vector.broadcast %12 : vector<8x1xi32> to vector<8x10xi32>
    %14 = arith.cmpi eq, %13, %5 : vector<8x10xi32>
    %15 = arith.extui %14 : vector<8x10xi1> to vector<8x10xi32>
    %16 = arith.sitofp %15 : vector<8x10xi32> to vector<8x10xf32>
    %cst_7 = arith.constant dense<0.000000e+00> : vector<8x128xf32>
    %17 = tpu.matmul %16, %3, %cst_7 {dimension_numbers = #tpu.dot_dimension_numbers<[1], [0], [0], [1], [0, 0, 1, 1], [], []>} : vector<8x10xf32>, vector<10x128xf32>, vector<8x128xf32> -> vector<8x128xf32>
    %18 = arith.addf %11, %17 : vector<8x128xf32>
    %c0_8 = arith.constant 0 : index
    %c0_9 = arith.constant 0 : index
    %19 = vector.load %arg2[%c0_8, %c0_9] : memref<8x1xi32, #tpu.memory_space<vmem>>, vector<8x1xi32>
    %20 = vector.broadcast %19 : vector<8x1xi32> to vector<8x50xi32>
    %21 = arith.cmpi eq, %20, %4 : vector<8x50xi32>
    %22 = arith.extui %21 : vector<8x50xi1> to vector<8x50xi32>
    %23 = arith.sitofp %22 : vector<8x50xi32> to vector<8x50xf32>
    %cst_10 = arith.constant dense<0.000000e+00> : vector<8x128xf32>
    %24 = tpu.matmul %23, %1, %cst_10 {dimension_numbers = #tpu.dot_dimension_numbers<[1], [0], [0], [1], [0, 0, 1, 1], [], []>} : vector<8x50xf32>, vector<50x128xf32>, vector<8x128xf32> -> vector<8x128xf32>
    %25 = arith.subf %18, %24 : vector<8x128xf32>
    %c0_11 = arith.constant 0 : index
    %c0_12 = arith.constant 0 : index
    %26 = vector.load %arg3[%c0_11, %c0_12] : memref<8x1xi32, #tpu.memory_space<vmem>>, vector<8x1xi32>
    %27 = vector.broadcast %26 : vector<8x1xi32> to vector<8x50xi32>
    %28 = arith.cmpi eq, %27, %4 : vector<8x50xi32>
    %29 = arith.extui %28 : vector<8x50xi1> to vector<8x50xi32>
    %30 = arith.sitofp %29 : vector<8x50xi32> to vector<8x50xf32>
    %cst_13 = arith.constant dense<0.000000e+00> : vector<8x128xf32>
    %31 = tpu.matmul %30, %1, %cst_13 {dimension_numbers = #tpu.dot_dimension_numbers<[1], [0], [0], [1], [0, 0, 1, 1], [], []>} : vector<8x50xf32>, vector<50x128xf32>, vector<8x128xf32> -> vector<8x128xf32>
    %c0_14 = arith.constant 0 : index
    %c0_15 = arith.constant 0 : index
    %32 = vector.load %arg6[%c0_14, %c0_15] : memref<8x1xi32, #tpu.memory_space<vmem>>, vector<8x1xi32>
    %33 = vector.broadcast %32 : vector<8x1xi32> to vector<8x10xi32>
    %34 = arith.cmpi eq, %33, %5 : vector<8x10xi32>
    %35 = arith.extui %34 : vector<8x10xi1> to vector<8x10xi32>
    %36 = arith.sitofp %35 : vector<8x10xi32> to vector<8x10xf32>
    %cst_16 = arith.constant dense<0.000000e+00> : vector<8x128xf32>
    %37 = tpu.matmul %36, %3, %cst_16 {dimension_numbers = #tpu.dot_dimension_numbers<[1], [0], [0], [1], [0, 0, 1, 1], [], []>} : vector<8x10xf32>, vector<10x128xf32>, vector<8x128xf32> -> vector<8x128xf32>
    %38 = arith.addf %31, %37 : vector<8x128xf32>
    %c0_17 = arith.constant 0 : index
    %c0_18 = arith.constant 0 : index
    %39 = vector.load %arg4[%c0_17, %c0_18] : memref<8x1xi32, #tpu.memory_space<vmem>>, vector<8x1xi32>
    %40 = vector.broadcast %39 : vector<8x1xi32> to vector<8x50xi32>
    %41 = arith.cmpi eq, %40, %4 : vector<8x50xi32>
    %42 = arith.extui %41 : vector<8x50xi1> to vector<8x50xi32>
    %43 = arith.sitofp %42 : vector<8x50xi32> to vector<8x50xf32>
    %cst_19 = arith.constant dense<0.000000e+00> : vector<8x128xf32>
    %44 = tpu.matmul %43, %1, %cst_19 {dimension_numbers = #tpu.dot_dimension_numbers<[1], [0], [0], [1], [0, 0, 1, 1], [], []>} : vector<8x50xf32>, vector<50x128xf32>, vector<8x128xf32> -> vector<8x128xf32>
    %45 = arith.subf %38, %44 : vector<8x128xf32>
    %46 = arith.mulf %25, %25 : vector<8x128xf32>
    %cst_20 = arith.constant dense<0.000000e+00> : vector<8xf32>
    %47 = vector.multi_reduction <add>, %46, %cst_20 [1] : vector<8x128xf32> to vector<8xf32>
    %48 = vector.shape_cast %47 : vector<8xf32> to vector<8x1xf32>
    %49 = math.sqrt %48 : vector<8x1xf32>
    %50 = arith.mulf %45, %45 : vector<8x128xf32>
    %cst_21 = arith.constant dense<0.000000e+00> : vector<8xf32>
    %51 = vector.multi_reduction <add>, %50, %cst_21 [1] : vector<8x128xf32> to vector<8xf32>
    %52 = vector.shape_cast %51 : vector<8xf32> to vector<8x1xf32>
    %53 = math.sqrt %52 : vector<8x1xf32>
    %cst_22 = arith.constant 1.000000e+00 : f32
    %54 = vector.broadcast %cst_22 : f32 to vector<8x1xf32>
    %55 = arith.addf %54, %49 : vector<8x1xf32>
    %56 = arith.subf %55, %53 : vector<8x1xf32>
    %cst_23 = arith.constant 0.000000e+00 : f32
    %57 = vector.broadcast %cst_23 : f32 to vector<8x1xf32>
    %58 = arith.maximumf %56, %57 : vector<8x1xf32>
    %c8_i32 = arith.constant 8 : i32
    %59 = arith.muli %arg0, %c8_i32 : i32
    %60 = tpu.iota {dimensions = array<i32: 0>} : vector<8x1xi32>
    %61 = vector.broadcast %59 : i32 to vector<8x1xi32>
    %62 = arith.addi %61, %60 : vector<8x1xi32>
    %c24_i32 = arith.constant 24 : i32
    %63 = vector.broadcast %c24_i32 : i32 to vector<8x1xi32>
    %64 = arith.cmpi slt, %62, %63 : vector<8x1xi32>
    %cst_24 = arith.constant 0.000000e+00 : f32
    %65 = vector.broadcast %cst_24 : f32 to vector<8x1xf32>
    %66 = arith.select %64, %58, %65 : vector<8x1xi1>, vector<8x1xf32>
    %cst_25 = arith.constant dense<0.000000e+00> : vector<1xf32>
    %67 = vector.multi_reduction <add>, %66, %cst_25 [0] : vector<8x1xf32> to vector<1xf32>
    %68 = vector.shape_cast %67 : vector<1xf32> to vector<1x1xf32>
    %69 = vector.shape_cast %68 : vector<1x1xf32> to vector<1x1x1xf32>
    %c0_26 = arith.constant 0 : index
    %c0_27 = arith.constant 0 : index
    %c0_28 = arith.constant 0 : index
    %70 = vector.load %arg9[%c0_26, %c0_27, %c0_28] : memref<1x1x1xf32, #tpu.memory_space<vmem>>, vector<1x1x1xf32>
    tpu.vector_store %arg9[%c0_26, %c0_27, %c0_28], %69 {strides = array<i32>} : memref<1x1x1xf32, #tpu.memory_space<vmem>>, vector<1x1x1xf32>,
    return
  }
  func.func @transform_0(%arg0: i32) -> (i32, i32) {
    %c0_i32 = arith.constant 0 : i32
    %c0_i32_0 = arith.constant 0 : i32
    return %arg0, %c0_i32 : i32, i32
  }
  func.func @transform_1(%arg0: i32) -> (i32, i32) {
    %c0_i32 = arith.constant 0 : i32
    %c0_i32_0 = arith.constant 0 : i32
    return %arg0, %c0_i32 : i32, i32
  }
  func.func @transform_2(%arg0: i32) -> (i32, i32) {
    %c0_i32 = arith.constant 0 : i32
    %c0_i32_0 = arith.constant 0 : i32
    return %arg0, %c0_i32 : i32, i32
  }
  func.func @transform_3(%arg0: i32) -> (i32, i32) {
    %c0_i32 = arith.constant 0 : i32
    %c0_i32_0 = arith.constant 0 : i32
    return %arg0, %c0_i32 : i32, i32
  }
  func.func @transform_4(%arg0: i32) -> (i32, i32) {
    %c0_i32 = arith.constant 0 : i32
    %c0_i32_0 = arith.constant 0 : i32
    return %arg0, %c0_i32 : i32, i32
  }
  func.func @transform_5(%arg0: i32) -> (i32, i32) {
    %c0_i32 = arith.constant 0 : i32
    %c0_i32_0 = arith.constant 0 : i32
    return %arg0, %c0_i32 : i32, i32
  }
  func.func @transform_6(%arg0: i32) -> (i32, i32) {
    %c0_i32 = arith.constant 0 : i32
    %c0_i32_0 = arith.constant 0 : i32
    %c0_i32_1 = arith.constant 0 : i32
    return %c0_i32, %c0_i32_0 : i32, i32
  }
  func.func @transform_7(%arg0: i32) -> (i32, i32) {
    %c0_i32 = arith.constant 0 : i32
    %c0_i32_0 = arith.constant 0 : i32
    %c0_i32_1 = arith.constant 0 : i32
    return %c0_i32, %c0_i32_0 : i32, i32
  }
  func.func @transform_8(%arg0: i32) -> (i32, i32, i32) {
    %c0_i32 = arith.constant 0 : i32
    %c0_i32_0 = arith.constant 0 : i32
    %c0_i32_1 = arith.constant 0 : i32
    return %arg0, %c0_i32, %c0_i32_0 : i32, i32, i32
  }
}

</mosaic_0001>

<llo_original>
// kernel: tpu_custom_call.1
$region0: #{tpu_custom_call.1}
  #allocation0 [shape = 'u32[]', space=smem, size = 0x4, offset = 0x4, fixed_abs, tag = 'smem constant byte address 0x4 - core index']
  #allocation1 [shape = 'u32[144,128]{1,0:T(1,128)}', space=vmem, size = 0x12000, scoped, tag = 'internal scratch']
  %s0 = inlined_call_operand.vmem [shape: s32[24,1], index: 0, kind: input, shape index: {}]
  %s1 = inlined_call_operand.vmem [shape: s32[24,1], index: 1, kind: input, shape index: {}]
  %s2 = inlined_call_operand.vmem [shape: s32[24,1], index: 2, kind: input, shape index: {}]
  %s3 = inlined_call_operand.vmem [shape: s32[24,1], index: 3, kind: input, shape index: {}]
  %s4 = inlined_call_operand.vmem [shape: s32[24,1], index: 4, kind: input, shape index: {}]
  %s5 = inlined_call_operand.vmem [shape: s32[24,1], index: 5, kind: input, shape index: {}]
  %s6 = inlined_call_operand.vmem [shape: bf16[50,128], index: 6, kind: input, shape index: {}]
  %s7 = inlined_call_operand.vmem [shape: bf16[10,128], index: 7, kind: input, shape index: {}]
  %s8 = inlined_call_operand.vmem [shape: f32[3,1,1], index: 8, kind: output, shape index: {}]
  %s9 = sld [smem:[#allocation0]]
  $region65: #{tpu_custom_call.1} parent=0
    _
  %s11 = ssub.s32 1, %s9
  %s12 = scalar_select 0, %s11, %s9
  loop: start=0, step=1, limit=5
  $region2: #{tpu_custom_call.1} parent=0 // loop_pre_header
    _
  $region3: #{tpu_custom_call.1} parent=0 // loop_header
    %s14 = sphi 0, %s18
    %p15 = scmp.ge.s32.totalorder %s14, 5
    %s24 = sphi 0, %s26
    %s27 = sphi 0, %s24
    %s28 = sphi 0, %s27
    %s44 = sphi 0, %s28
    %s50 = sphi 0, %s52
    %s53 = sphi 0, %s50
    %s54 = sphi 0, %s53
    %s70 = sphi 0, %s54
    %s76 = sphi 0, %s78
    %s79 = sphi 0, %s76
    %s80 = sphi 0, %s79
    %s96 = sphi 0, %s80
    %s102 = sphi 0, %s104
    %s105 = sphi 0, %s102
    %s106 = sphi 0, %s105
    %s122 = sphi 0, %s106
    %s128 = sphi 0, %s130
    %s131 = sphi 0, %s128
    %s132 = sphi 0, %s131
    %s148 = sphi 0, %s132
    %s154 = sphi 0, %s156
    %s157 = sphi 0, %s154
    %s158 = sphi 0, %s157
    %s174 = sphi 0, %s158
    %s178 = sphi 0, %s178
    %s180 = sphi 0, %s178
    %s181 = sphi 0, %s180
    %s195 = sphi 0, %s181
    %s199 = sphi 0, %s199
    %s201 = sphi 0, %s199
    %s202 = sphi 0, %s201
    %s216 = sphi 0, %s202
    %s222 = sphi 0, %s224
    %s225 = sphi 0, %s222
    %s226 = sphi 0, %s225
    %s242 = sphi 0, %s226
  $region4: #{tpu_custom_call.1} parent=0 // loop_header_branch
    %17 = sbr.rel (%p15) target = $region8
  $region5: #{tpu_custom_call.1} parent=0 // loop_body
    %s19 = ssub.s32 %s14, 1
    %s20 = ssub.s32 %s14, 2
    %s21 = sadd.s32 %s14, 1
    %s22 = ssub.s32 %s14, %s21
    %p23 = scmp.eq.s32.totalorder %s22, 0
    %s25 = sadd.s32 %s24, 1
    %s26 = scalar_select %p23, %s24, %s25
    %p29 = pneg %p23
    %p30 = scmp.eq.s32.totalorder %s14, 2
    %p31 = por %p29, %p30
    %p32 = scmp.ne.s32.totalorder %s24, %s27
    %p33 = scmp.eq.s32.totalorder %s14, 0
    %p34 = por %p32, %p33
    %p35 = scmp.ne.s32.totalorder %s24, %s27
    %p36 = scmp.eq.s32.totalorder %s19, 2
    %p37 = por %p35, %p36
    %p38 = scmp.ne.s32.totalorder %s27, %s28
    %p39 = scmp.eq.s32.totalorder %s19, 0
    %p40 = por %p38, %p39
    %p41 = scmp.ne.s32.totalorder %s27, %s28
    %p42 = scmp.eq.s32.totalorder %s20, 2
    %p43 = por %p41, %p42
    %p45 = scmp.ne.s32.totalorder %s28, %s44
    %p46 = scmp.eq.s32.totalorder %s20, 0
    %p47 = por %p45, %p46
    %s48 = ssub.s32 %s14, %s21
    %p49 = scmp.eq.s32.totalorder %s48, 0
    %s51 = sadd.s32 %s50, 1
    %s52 = scalar_select %p49, %s50, %s51
    %p55 = pneg %p49
    %p56 = scmp.eq.s32.totalorder %s14, 2
    %p57 = por %p55, %p56
    %p58 = scmp.ne.s32.totalorder %s50, %s53
    %p59 = scmp.eq.s32.totalorder %s14, 0
    %p60 = por %p58, %p59
    %p61 = scmp.ne.s32.totalorder %s50, %s53
    %p62 = scmp.eq.s32.totalorder %s19, 2
    %p63 = por %p61, %p62
    %p64 = scmp.ne.s32.totalorder %s53, %s54
    %p65 = scmp.eq.s32.totalorder %s19, 0
    %p66 = por %p64, %p65
    %p67 = scmp.ne.s32.totalorder %s53, %s54
    %p68 = scmp.eq.s32.totalorder %s20, 2
    %p69 = por %p67, %p68
    %p71 = scmp.ne.s32.totalorder %s54, %s70
    %p72 = scmp.eq.s32.totalorder %s20, 0
    %p73 = por %p71, %p72
    %s74 = ssub.s32 %s14, %s21
    %p75 = scmp.eq.s32.totalorder %s74, 0
    %s77 = sadd.s32 %s76, 1
    %s78 = scalar_select %p75, %s76, %s77
    %p81 = pneg %p75
    %p82 = scmp.eq.s32.totalorder %s14, 2
    %p83 = por %p81, %p82
    %p84 = scmp.ne.s32.totalorder %s76, %s79
    %p85 = scmp.eq.s32.totalorder %s14, 0
    %p86 = por %p84, %p85
    %p87 = scmp.ne.s32.totalorder %s76, %s79
    %p88 = scmp.eq.s32.totalorder %s19, 2
    %p89 = por %p87, %p88
    %p90 = scmp.ne.s32.totalorder %s79, %s80
    %p91 = scmp.eq.s32.totalorder %s19, 0
    %p92 = por %p90, %p91
    %p93 = scmp.ne.s32.totalorder %s79, %s80
    %p94 = scmp.eq.s32.totalorder %s20, 2
    %p95 = por %p93, %p94
    %p97 = scmp.ne.s32.totalorder %s80, %s96
    %p98 = scmp.eq.s32.totalorder %s20, 0
    %p99 = por %p97, %p98
    %s100 = ssub.s32 %s14, %s21
    %p101 = scmp.eq.s32.totalorder %s100, 0
    %s103 = sadd.s32 %s102, 1
    %s104 = scalar_select %p101, %s102, %s103
    %p107 = pneg %p101
    %p108 = scmp.eq.s32.totalorder %s14, 2
    %p109 = por %p107, %p108
    %p110 = scmp.ne.s32.totalorder %s102, %s105
    %p111 = scmp.eq.s32.totalorder %s14, 0
    %p112 = por %p110, %p111
    %p113 = scmp.ne.s32.totalorder %s102, %s105
    %p114 = scmp.eq.s32.totalorder %s19, 2
    %p115 = por %p113, %p114
    %p116 = scmp.ne.s32.totalorder %s105, %s106
    %p117 = scmp.eq.s32.totalorder %s19, 0
    %p118 = por %p116, %p117
    %p119 = scmp.ne.s32.totalorder %s105, %s106
    %p120 = scmp.eq.s32.totalorder %s20, 2
    %p121 = por %p119, %p120
    %p123 = scmp.ne.s32.totalorder %s106, %s122
    %p124 = scmp.eq.s32.totalorder %s20, 0
    %p125 = por %p123, %p124
    %s126 = ssub.s32 %s14, %s21
    %p127 = scmp.eq.s32.totalorder %s126, 0
    %s129 = sadd.s32 %s128, 1
    %s130 = scalar_select %p127, %s128, %s129
    %p133 = pneg %p127
    %p134 = scmp.eq.s32.totalorder %s14, 2
    %p135 = por %p133, %p134
    %p136 = scmp.ne.s32.totalorder %s128, %s131
    %p137 = scmp.eq.s32.totalorder %s14, 0
    %p138 = por %p136, %p137
    %p139 = scmp.ne.s32.totalorder %s128, %s131
    %p140 = scmp.eq.s32.totalorder %s19, 2
    %p141 = por %p139, %p140
    %p142 = scmp.ne.s32.totalorder %s131, %s132
    %p143 = scmp.eq.s32.totalorder %s19, 0
    %p144 = por %p142, %p143
    %p145 = scmp.ne.s32.totalorder %s131, %s132
    %p146 = scmp.eq.s32.totalorder %s20, 2
    %p147 = por %p145, %p146
    %p149 = scmp.ne.s32.totalorder %s132, %s148
    %p150 = scmp.eq.s32.totalorder %s20, 0
    %p151 = por %p149, %p150
    %s152 = ssub.s32 %s14, %s21
    %p153 = scmp.eq.s32.totalorder %s152, 0
    %s155 = sadd.s32 %s154, 1
    %s156 = scalar_select %p153, %s154, %s155
    %p159 = pneg %p153
    %p160 = scmp.eq.s32.totalorder %s14, 2
    %p161 = por %p159, %p160
    %p162 = scmp.ne.s32.totalorder %s154, %s157
    %p163 = scmp.eq.s32.totalorder %s14, 0
    %p164 = por %p162, %p163
    %p165 = scmp.ne.s32.totalorder %s154, %s157
    %p166 = scmp.eq.s32.totalorder %s19, 2
    %p167 = por %p165, %p166
    %p168 = scmp.ne.s32.totalorder %s157, %s158
    %p169 = scmp.eq.s32.totalorder %s19, 0
    %p170 = por %p168, %p169
    %p171 = scmp.ne.s32.totalorder %s157, %s158
    %p172 = scmp.eq.s32.totalorder %s20, 2
    %p173 = por %p171, %p172
    %p175 = scmp.ne.s32.totalorder %s158, %s174
    %p176 = scmp.eq.s32.totalorder %s20, 0
    %p177 = por %p175, %p176
    %s179 = sadd.s32 %s178, 1
    %p182 = scmp.eq.s32.totalorder %s14, 2
    %p183 = scmp.ne.s32.totalorder %s178, %s180
    %p184 = scmp.eq.s32.totalorder %s14, 0
    %p185 = por %p183, %p184
    %p186 = scmp.ne.s32.totalorder %s178, %s180
    %p187 = scmp.eq.s32.totalorder %s19, 2
    %p188 = por %p186, %p187
    %p189 = scmp.ne.s32.totalorder %s180, %s181
    %p190 = scmp.eq.s32.totalorder %s19, 0
    %p191 = por %p189, %p190
    %p192 = scmp.ne.s32.totalorder %s180, %s181
    %p193 = scmp.eq.s32.totalorder %s20, 2
    %p194 = por %p192, %p193
    %p196 = scmp.ne.s32.totalorder %s181, %s195
    %p197 = scmp.eq.s32.totalorder %s20, 0
    %p198 = por %p196, %p197
    %s200 = sadd.s32 %s199, 1
    %p203 = scmp.eq.s32.totalorder %s14, 2
    %p204 = scmp.ne.s32.totalorder %s199, %s201
    %p205 = scmp.eq.s32.totalorder %s14, 0
    %p206 = por %p204, %p205
    %p207 = scmp.ne.s32.totalorder %s199, %s201
    %p208 = scmp.eq.s32.totalorder %s19, 2
    %p209 = por %p207, %p208
    %p210 = scmp.ne.s32.totalorder %s201, %s202
    %p211 = scmp.eq.s32.totalorder %s19, 0
    %p212 = por %p210, %p211
    %p213 = scmp.ne.s32.totalorder %s201, %s202
    %p214 = scmp.eq.s32.totalorder %s20, 2
    %p215 = por %p213, %p214
    %p217 = scmp.ne.s32.totalorder %s202, %s216
    %p218 = scmp.eq.s32.totalorder %s20, 0
    %p219 = por %p217, %p218
    %s220 = ssub.s32 %s14, %s21
    %p221 = scmp.eq.s32.totalorder %s220, 0
    %s223 = sadd.s32 %s222, 1
    %s224 = scalar_select %p221, %s222, %s223
    %p227 = pneg %p221
    %p228 = scmp.eq.s32.totalorder %s14, 2
    %p229 = por %p227, %p228
    %p230 = scmp.ne.s32.totalorder %s222, %s225
    %p231 = scmp.eq.s32.totalorder %s14, 0
    %p232 = por %p230, %p231
    %p233 = scmp.ne.s32.totalorder %s222, %s225
    %p234 = scmp.eq.s32.totalorder %s19, 2
    %p235 = por %p233, %p234
    %p236 = scmp.ne.s32.totalorder %s225, %s226
    %p237 = scmp.eq.s32.totalorder %s19, 0
    %p238 = por %p236, %p237
    %p239 = scmp.ne.s32.totalorder %s225, %s226
    %p240 = scmp.eq.s32.totalorder %s20, 2
    %p241 = por %p239, %p240
    %p243 = scmp.ne.s32.totalorder %s226, %s242
    %p244 = scmp.eq.s32.totalorder %s20, 0
    %p245 = por %p243, %p244
    %p246 = scmp.le.s32.totalorder 1, %s14
    %p247 = scmp.lt.s32.totalorder %s14, 4
    %p248 = pnand %p246, %p247
    %p249 = pneg %p248
    // Predicated region
    $region9: #{tpu_custom_call.1} parent=5 // pred_check
      _
    $region10: #{tpu_custom_call.1} parent=5 // pred_check_branch
      %251 = sbr.rel (%p248) target = $region12
    $region11: #{tpu_custom_call.1} parent=5 // pred_region
      %s252 = ssub.s32 %s14, 1
      // Predicated region
      $region13: #{tpu_custom_call.1} parent=11 // pred_check
        %p253 = pneg %p191
      $region14: #{tpu_custom_call.1} parent=11 // pred_check_branch
        %255 = sbr.rel (%p253) target = $region16
      $region15: #{tpu_custom_call.1} parent=11 // pred_region
        _
      $region16: #{tpu_custom_call.1} parent=11 // pred_fallthru
        _
      // Predicated region
      $region17: #{tpu_custom_call.1} parent=11 // pred_check
        %p256 = pneg %p212
      $region18: #{tpu_custom_call.1} parent=11 // pred_check_branch
        %258 = sbr.rel (%p256) target = $region20
      $region19: #{tpu_custom_call.1} parent=11 // pred_region
        _
      $region20: #{tpu_custom_call.1} parent=11 // pred_fallthru
        _
    $region12: #{tpu_custom_call.1} parent=5 // pred_fallthru
      _
    %p259 = scmp.lt.s32.totalorder %s14, 3
    // Predicated region
    $region21: #{tpu_custom_call.1} parent=5 // pred_check
      %p260 = pneg %p259
    $region22: #{tpu_custom_call.1} parent=5 // pred_check_branch
      %262 = sbr.rel (%p260) target = $region24
    $region23: #{tpu_custom_call.1} parent=5 // pred_region
      // Predicated region
      $region25: #{tpu_custom_call.1} parent=23 // pred_check
        %p263 = pneg %p34
      $region26: #{tpu_custom_call.1} parent=23 // pred_check_branch
        %265 = sbr.rel (%p263) target = $region28
      $region27: #{tpu_custom_call.1} parent=23 // pred_region
        %p266 = scmp.lt.s32.totalorder %s14, 2
        %s267 = scalar_select %p266, %s14, 2
        %s268 = smul.addr %s267, 8
        %s269 = scalar_lea.vmem %s0, %s268
      $region28: #{tpu_custom_call.1} parent=23 // pred_fallthru
        _
      // Predicated region
      $region29: #{tpu_custom_call.1} parent=23 // pred_check
        %p270 = pneg %p60
      $region30: #{tpu_custom_call.1} parent=23 // pred_check_branch
        %272 = sbr.rel (%p270) target = $region32
      $region31: #{tpu_custom_call.1} parent=23 // pred_region
        %p273 = scmp.lt.s32.totalorder %s14, 2
        %s274 = scalar_select %p273, %s14, 2
        %s275 = smul.addr %s274, 8
        %s276 = scalar_lea.vmem %s1, %s275
      $region32: #{tpu_custom_call.1} parent=23 // pred_fallthru
        _
      // Predicated region
      $region33: #{tpu_custom_call.1} parent=23 // pred_check
        %p277 = pneg %p86
      $region34: #{tpu_custom_call.1} parent=23 // pred_check_branch
        %279 = sbr.rel (%p277) target = $region36
      $region35: #{tpu_custom_call.1} parent=23 // pred_region
        %p280 = scmp.lt.s32.totalorder %s14, 2
        %s281 = scalar_select %p280, %s14, 2
        %s282 = smul.addr %s281, 8
        %s283 = scalar_lea.vmem %s2, %s282
      $region36: #{tpu_custom_call.1} parent=23 // pred_fallthru
        _
      // Predicated region
      $region37: #{tpu_custom_call.1} parent=23 // pred_check
        %p284 = pneg %p112
      $region38: #{tpu_custom_call.1} parent=23 // pred_check_branch
        %286 = sbr.rel (%p284) target = $region40
      $region39: #{tpu_custom_call.1} parent=23 // pred_region
        %p287 = scmp.lt.s32.totalorder %s14, 2
        %s288 = scalar_select %p287, %s14, 2
        %s289 = smul.addr %s288, 8
        %s290 = scalar_lea.vmem %s3, %s289
      $region40: #{tpu_custom_call.1} parent=23 // pred_fallthru
        _
      // Predicated region
      $region41: #{tpu_custom_call.1} parent=23 // pred_check
        %p291 = pneg %p138
      $region42: #{tpu_custom_call.1} parent=23 // pred_check_branch
        %293 = sbr.rel (%p291) target = $region44
      $region43: #{tpu_custom_call.1} parent=23 // pred_region
        %p294 = scmp.lt.s32.totalorder %s14, 2
        %s295 = scalar_select %p294, %s14, 2
        %s296 = smul.addr %s295, 8
        %s297 = scalar_lea.vmem %s4, %s296
      $region44: #{tpu_custom_call.1} parent=23 // pred_fallthru
        _
      // Predicated region
      $region45: #{tpu_custom_call.1} parent=23 // pred_check
        %p298 = pneg %p164
      $region46: #{tpu_custom_call.1} parent=23 // pred_check_branch
        %300 = sbr.rel (%p298) target = $region48
      $region47: #{tpu_custom_call.1} parent=23 // pred_region
        %p301 = scmp.lt.s32.totalorder %s14, 2
        %s302 = scalar_select %p301, %s14, 2
        %s303 = smul.addr %s302, 8
        %s304 = scalar_lea.vmem %s5, %s303
      $region48: #{tpu_custom_call.1} parent=23 // pred_fallthru
        _
    $region24: #{tpu_custom_call.1} parent=5 // pred_fallthru
      _
    %p305 = scmp.le.s32.totalorder 1, %s14
    %p306 = scmp.lt.s32.totalorder %s14, 4
    %p307 = pnand %p305, %p306
    %p308 = pneg %p307
    // Predicated region
    $region49: #{tpu_custom_call.1} parent=5 // pred_check
      _
    $region50: #{tpu_custom_call.1} parent=5 // pred_check_branch
      %310 = sbr.rel (%p307) target = $region52
    $region51: #{tpu_custom_call.1} parent=5 // pred_region
      %s311 = ssub.s32 %s14, 1
      %p312 = scmp.lt.s32.totalorder %s19, 2
      %s313 = scalar_select %p312, %s19, 2
      %s314 = smul.addr %s313, 8
      %s315 = scalar_lea.vmem %s0, %s314
      %p316 = pneg %p40
      %p317 = pneg %p37
      %p318 = scmp.lt.s32.totalorder %s19, 2
      %s319 = scalar_select %p318, %s19, 2
      %s320 = smul.addr %s319, 8
      %s321 = scalar_lea.vmem %s1, %s320
      %p322 = pneg %p66
      %p323 = pneg %p63
      %p324 = scmp.lt.s32.totalorder %s19, 2
      %s325 = scalar_select %p324, %s19, 2
      %s326 = smul.addr %s325, 8
      %s327 = scalar_lea.vmem %s2, %s326
      %p328 = pneg %p92
      %p329 = pneg %p89
      %p330 = scmp.lt.s32.totalorder %s19, 2
      %s331 = scalar_select %p330, %s19, 2
      %s332 = smul.addr %s331, 8
      %s333 = scalar_lea.vmem %s3, %s332
      %p334 = pneg %p118
      %p335 = pneg %p115
      %p336 = scmp.lt.s32.totalorder %s19, 2
      %s337 = scalar_select %p336, %s19, 2
      %s338 = smul.addr %s337, 8
      %s339 = scalar_lea.vmem %s4, %s338
      %p340 = pneg %p144
      %p341 = pneg %p141
      %p342 = scmp.lt.s32.totalorder %s19, 2
      %s343 = scalar_select %p342, %s19, 2
      %s344 = smul.addr %s343, 8
      %s345 = scalar_lea.vmem %s5, %s344
      %p346 = pneg %p170
      %p347 = pneg %p167
      %p348 = pneg %p191
      %p349 = pneg %p188
      %p350 = pneg %p212
      %p351 = pneg %p209
      %p352 = pneg %p238
      %p353 = pneg %p235
      %p354 = scmp.lt.s32.totalorder %s19, 2
      %s355 = scalar_select %p354, %s19, 2
      %s356 = scalar_lea.vmem %s8, %s355
      %p357 = scmp.lt.s32.totalorder %s19, 2
      %s358 = scalar_select %p357, %s19, 2
      %s359 = smul.addr %s358, 8
      %s360 = scalar_lea.vmem %s0, %s359
      %p361 = scmp.lt.s32.totalorder %s19, 2
      %s362 = scalar_select %p361, %s19, 2
      %s363 = smul.addr %s362, 8
      %s364 = scalar_lea.vmem %s1, %s363
      %p365 = scmp.lt.s32.totalorder %s19, 2
      %s366 = scalar_select %p365, %s19, 2
      %s367 = smul.addr %s366, 8
      %s368 = scalar_lea.vmem %s2, %s367
      %p369 = scmp.lt.s32.totalorder %s19, 2
      %s370 = scalar_select %p369, %s19, 2
      %s371 = smul.addr %s370, 8
      %s372 = scalar_lea.vmem %s3, %s371
      %p373 = scmp.lt.s32.totalorder %s19, 2
      %s374 = scalar_select %p373, %s19, 2
      %s375 = smul.addr %s374, 8
      %s376 = scalar_lea.vmem %s4, %s375
      %p377 = scmp.lt.s32.totalorder %s19, 2
      %s378 = scalar_select %p377, %s19, 2
      %s379 = smul.addr %s378, 8
      %s380 = scalar_lea.vmem %s5, %s379
      %p381 = scmp.lt.s32.totalorder %s19, 2
      %s382 = scalar_select %p381, %s19, 2
      %s383 = scalar_lea.vmem %s8, %s382
      %v384 = vld [vmem:[%s6] sm:$0xf]
      %v385 = vld [vmem:[%s6 + $0x4] sm:$0xf]
      %v386 = vld [vmem:[%s6 + $0x8] sm:$0xf]
      %v387 = vld [vmem:[%s6 + $0xc] sm:$0xf]
      %v388 = vld [vmem:[%s6 + $0x10] sm:$0xf]
      %v389 = vld [vmem:[%s6 + $0x14] sm:$0xf]
      %v390 = vld [vmem:[%s6 + $0x18] sm:$0x1]
      %v391 = vunpack.c.l.bf16 %v384
      %v392 = vunpack.c.l.bf16 %v385
      %v393 = vunpack.c.l.bf16 %v386
      %v394 = vunpack.c.l.bf16 %v387
      %v395 = vunpack.c.l.bf16 %v388
      %v396 = vunpack.c.l.bf16 %v389
      %v397 = vunpack.c.l.bf16 %v390
      %v398 = vld [vmem:[%s7] sm:$0xf]
      %v399 = vld [vmem:[%s7 + $0x4] sm:$0x1]
      %v400 = vunpack.c.l.bf16 %v398
      %v401 = vunpack.c.l.bf16 %v399
      %v402 = vlaneseq
      %v403 = vand.u32 %v402, 127
      %v404 = vld [vmem:[%s360] sm:$0xff]
      %405 = vset.pattern.permute.xlu0 0
      %406 = vperm.xlu0 %405, %v404
      %v407 = vpop.permute.xlu0 %406
      %vm408 = vcmp.eq.s32.totalorder %v407, %v403
      %v409 = vsel %vm408, 1, 0
      %v410 = vcvt.s32.f32 %v409
      %v411 = vld [vmem:[%s376] sm:$0xff]
      %412 = vset.pattern.permute.xlu0 0
      %413 = vperm.xlu0 %412, %v411
      %v414 = vpop.permute.xlu0 %413
      %vm415 = vcmp.eq.s32.totalorder %v414, %v403
      %v416 = vsel %vm415, 1, 0
      %v417 = vcvt.s32.f32 %v416
      %vm418 = vcmask 80896
      %v420 = vsel %vm418, %v417, 0
      %vm422 = vcmask 1041408
      %v424 = vsel %vm422, %v401, 0
      %426 = vmatprep.subr.mxu0 0.0
      %427 = vmatpush1.msra.mxu0 0.0
      %428 = vmatprep.subr.mxu0 0.0
      %429 = vmatpush1.msra.mxu0 0.0
      %430 = vmatprep.subr.mxu0 0.0
      %431 = vmatpush1.msra.mxu0 0.0
      %432 = vmatprep.subr.mxu0 0.0
      %433 = vmatpush1.msra.mxu0 0.0
      %434 = vmatprep.subr.mxu0 0.0
      %435 = vmatpush1.msra.mxu0 0.0
      %436 = vmatprep.subr.mxu0 0.0
      %437 = vmatpush1.msra.mxu0 0.0
      %438 = vmatprep.subr.mxu0 0.0
      %439 = vmatpush1.msra.mxu0 0.0
      %440 = vmatprep.subr.mxu0 0.0
      %441 = vmatpush1.msra.mxu0 0.0
      %442 = vmatprep.subr.mxu0 0.0
      %443 = vmatpush1.msra.mxu0 0.0
      %444 = vmatprep.subr.mxu0 0.0
      %445 = vmatpush1.msra.mxu0 0.0
      %446 = vmatprep.subr.mxu0 0.0
      %447 = vmatpush1.msra.mxu0 0.0
      %448 = vmatprep.subr.mxu0 0.0
      %449 = vmatpush1.msra.mxu0 0.0
      %450 = vmatprep.subr.mxu0 0.0
      %451 = vmatpush1.msra.mxu0 0.0
      %452 = vmatprep.subr.mxu0 0.0
      %453 = vmatpush1.msra.mxu0 0.0
      %454 = vmatprep.subr.mxu0 0.0
      %455 = vmatpush1.msra.mxu0 %v424
      %456 = vmatprep.subr.mxu0 0.0
      %457 = vmatpush1.msra.mxu0 %v400
      %458 = vmatprep.subr.mxu0 0.0
      %459 = vmatpush2.msra.mxu0 0.0
      %460 = vmatprep.subr.mxu0 0.0
      %461 = vmatpush2.msra.mxu0 0.0
      %462 = vmatprep.subr.mxu0 0.0
      %463 = vmatpush2.msra.mxu0 0.0
      %464 = vmatprep.subr.mxu0 0.0
      %465 = vmatpush2.msra.mxu0 0.0
      %466 = vmatprep.subr.mxu0 0.0
      %467 = vmatpush2.msra.mxu0 0.0
      %468 = vmatprep.subr.mxu0 0.0
      %469 = vmatpush2.msra.mxu0 0.0
      %470 = vmatprep.subr.mxu0 0.0
      %471 = vmatpush2.msra.mxu0 0.0
      %472 = vmatprep.subr.mxu0 0.0
      %473 = vmatpush2.msra.mxu0 0.0
      %474 = vmatprep.subr.mxu0 0.0
      %475 = vmatpush2.msra.mxu0 0.0
      %476 = vmatprep.subr.mxu0 0.0
      %477 = vmatpush2.msra.mxu0 0.0
      %478 = vmatprep.subr.mxu0 0.0
      %479 = vmatpush2.msra.mxu0 0.0
      %480 = vmatprep.subr.mxu0 0.0
      %481 = vmatpush2.msra.mxu0 0.0
      %482 = vmatprep.subr.mxu0 0.0
      %483 = vmatpush2.msra.mxu0 0.0
      %484 = vmatprep.subr.mxu0 0.0
      %485 = vmatpush2.msra.mxu0 0.0
      %486 = vmatprep.subr.mxu0 0.0
      %487 = vmatpush2.msra.mxu0 0.0
      %488 = vmatprep.subr.mxu0 0.0
      %489 = vmatpush2.msra.mxu0 0.0
      %490 = vmatprep.mubr.f32.mxu0 0.0
      %491 = vmatmul.mubr.f32.gmra.mxu0 %v420
      %v492 = vpop.f32.mrf.mxu0
      %v493 = vadd.f32 0.0, %v492
      %v494 = vpop.f32.mrf.mxu0
      %495 = vdwg.mxu0
      %vm496 = vcmask 408576
      %v498 = vsel %vm496, %v410, 0
      %v501 = vsel %vm422, %v397, 0
      %503 = vmatprep.subr.mxu0 0.0
      %504 = vmatpush1.msra.mxu0 0.0
      %505 = vmatprep.subr.mxu0 0.0
      %506 = vmatpush1.msra.mxu0 0.0
      %507 = vmatprep.subr.mxu0 0.0
      %508 = vmatpush1.msra.mxu0 0.0
      %509 = vmatprep.subr.mxu0 0.0
      %510 = vmatpush1.msra.mxu0 0.0
      %511 = vmatprep.subr.mxu0 0.0
      %512 = vmatpush1.msra.mxu0 0.0
      %513 = vmatprep.subr.mxu0 0.0
      %514 = vmatpush1.msra.mxu0 0.0
      %515 = vmatprep.subr.mxu0 0.0
      %516 = vmatpush1.msra.mxu0 0.0
      %517 = vmatprep.subr.mxu0 0.0
      %518 = vmatpush1.msra.mxu0 0.0
      %519 = vmatprep.subr.mxu0 0.0
      %520 = vmatpush1.msra.mxu0 0.0
      %521 = vmatprep.subr.mxu0 0.0
      %522 = vmatpush1.msra.mxu0 %v501
      %523 = vmatprep.subr.mxu0 0.0
      %524 = vmatpush1.msra.mxu0 %v396
      %525 = vmatprep.subr.mxu0 0.0
      %526 = vmatpush1.msra.mxu0 %v395
      %527 = vmatprep.subr.mxu0 0.0
      %528 = vmatpush1.msra.mxu0 %v394
      %529 = vmatprep.subr.mxu0 0.0
      %530 = vmatpush1.msra.mxu0 %v393
      %531 = vmatprep.subr.mxu0 0.0
      %532 = vmatpush1.msra.mxu0 %v392
      %533 = vmatprep.subr.mxu0 0.0
      %534 = vmatpush1.msra.mxu0 %v391
      %535 = vmatprep.subr.mxu0 0.0
      %536 = vmatpush2.msra.mxu0 0.0
      %537 = vmatprep.subr.mxu0 0.0
      %538 = vmatpush2.msra.mxu0 0.0
      %539 = vmatprep.subr.mxu0 0.0
      %540 = vmatpush2.msra.mxu0 0.0
      %541 = vmatprep.subr.mxu0 0.0
      %542 = vmatpush2.msra.mxu0 0.0
      %543 = vmatprep.subr.mxu0 0.0
      %544 = vmatpush2.msra.mxu0 0.0
      %545 = vmatprep.subr.mxu0 0.0
      %546 = vmatpush2.msra.mxu0 0.0
      %547 = vmatprep.subr.mxu0 0.0
      %548 = vmatpush2.msra.mxu0 0.0
      %549 = vmatprep.subr.mxu0 0.0
      %550 = vmatpush2.msra.mxu0 0.0
      %551 = vmatprep.subr.mxu0 0.0
      %552 = vmatpush2.msra.mxu0 0.0
      %553 = vmatprep.subr.mxu0 0.0
      %554 = vmatpush2.msra.mxu0 0.0
      %555 = vmatprep.subr.mxu0 0.0
      %556 = vmatpush2.msra.mxu0 0.0
      %557 = vmatprep.subr.mxu0 0.0
      %558 = vmatpush2.msra.mxu0 0.0
      %559 = vmatprep.subr.mxu0 0.0
      %560 = vmatpush2.msra.mxu0 0.0
      %561 = vmatprep.subr.mxu0 0.0
      %562 = vmatpush2.msra.mxu0 0.0
      %563 = vmatprep.subr.mxu0 0.0
      %564 = vmatpush2.msra.mxu0 0.0
      %565 = vmatprep.subr.mxu0 0.0
      %566 = vmatpush2.msra.mxu0 0.0
      %567 = vmatprep.mubr.f32.mxu0 0.0
      %568 = vmatmul.mubr.f32.gmra.mxu0 %v498
      %v569 = vpop.f32.mrf.mxu0
      %v570 = vadd.f32 %v493, %v569
      %v571 = vpop.f32.mrf.mxu0
      %572 = vdwg.mxu0
      %v573 = vld [vmem:[%s364] sm:$0xff]
      %574 = vset.pattern.permute.xlu0 0
      %575 = vperm.xlu0 %574, %v573
      %v576 = vpop.permute.xlu0 %575
      %vm577 = vcmp.eq.s32.totalorder %v576, %v403
      %v578 = vsel %vm577, 1, 0
      %v579 = vcvt.s32.f32 %v578
      %v581 = vsel %vm496, %v579, 0
      %583 = vmatprep.subr.mxu0 0.0
      %584 = vmatpush1.msra.mxu0 0.0
      %585 = vmatprep.subr.mxu0 0.0
      %586 = vmatpush1.msra.mxu0 0.0
      %587 = vmatprep.subr.mxu0 0.0
      %588 = vmatpush1.msra.mxu0 0.0
      %589 = vmatprep.subr.mxu0 0.0
      %590 = vmatpush1.msra.mxu0 0.0
      %591 = vmatprep.subr.mxu0 0.0
      %592 = vmatpush1.msra.mxu0 0.0
      %593 = vmatprep.subr.mxu0 0.0
      %594 = vmatpush1.msra.mxu0 0.0
      %595 = vmatprep.subr.mxu0 0.0
      %596 = vmatpush1.msra.mxu0 0.0
      %597 = vmatprep.subr.mxu0 0.0
      %598 = vmatpush1.msra.mxu0 0.0
      %599 = vmatprep.subr.mxu0 0.0
      %600 = vmatpush1.msra.mxu0 0.0
      %601 = vmatprep.subr.mxu0 0.0
      %602 = vmatpush1.msra.mxu0 %v501
      %603 = vmatprep.subr.mxu0 0.0
      %604 = vmatpush1.msra.mxu0 %v396
      %605 = vmatprep.subr.mxu0 0.0
      %606 = vmatpush1.msra.mxu0 %v395
      %607 = vmatprep.subr.mxu0 0.0
      %608 = vmatpush1.msra.mxu0 %v394
      %609 = vmatprep.subr.mxu0 0.0
      %610 = vmatpush1.msra.mxu0 %v393
      %611 = vmatprep.subr.mxu0 0.0
      %612 = vmatpush1.msra.mxu0 %v392
      %613 = vmatprep.subr.mxu0 0.0
      %614 = vmatpush1.msra.mxu0 %v391
      %615 = vmatprep.subr.mxu0 0.0
      %616 = vmatpush2.msra.mxu0 0.0
      %617 = vmatprep.subr.mxu0 0.0
      %618 = vmatpush2.msra.mxu0 0.0
      %619 = vmatprep.subr.mxu0 0.0
      %620 = vmatpush2.msra.mxu0 0.0
      %621 = vmatprep.subr.mxu0 0.0
      %622 = vmatpush2.msra.mxu0 0.0
      %623 = vmatprep.subr.mxu0 0.0
      %624 = vmatpush2.msra.mxu0 0.0
      %625 = vmatprep.subr.mxu0 0.0
      %626 = vmatpush2.msra.mxu0 0.0
      %627 = vmatprep.subr.mxu0 0.0
      %628 = vmatpush2.msra.mxu0 0.0
      %629 = vmatprep.subr.mxu0 0.0
      %630 = vmatpush2.msra.mxu0 0.0
      %631 = vmatprep.subr.mxu0 0.0
      %632 = vmatpush2.msra.mxu0 0.0
      %633 = vmatprep.subr.mxu0 0.0
      %634 = vmatpush2.msra.mxu0 0.0
      %635 = vmatprep.subr.mxu0 0.0
      %636 = vmatpush2.msra.mxu0 0.0
      %637 = vmatprep.subr.mxu0 0.0
      %638 = vmatpush2.msra.mxu0 0.0
      %639 = vmatprep.subr.mxu0 0.0
      %640 = vmatpush2.msra.mxu0 0.0
      %641 = vmatprep.subr.mxu0 0.0
      %642 = vmatpush2.msra.mxu0 0.0
      %643 = vmatprep.subr.mxu0 0.0
      %644 = vmatpush2.msra.mxu0 0.0
      %645 = vmatprep.subr.mxu0 0.0
      %646 = vmatpush2.msra.mxu0 0.0
      %647 = vmatprep.mubr.f32.mxu0 0.0
      %648 = vmatmul.mubr.f32.gmra.mxu0 %v581
      %v649 = vpop.f32.mrf.mxu0
      %v650 = vadd.f32 0.0, %v649
      %v651 = vpop.f32.mrf.mxu0
      %652 = vdwg.mxu0
      %v653 = vsub.f32 %v570, %v650
      %v654 = vld [vmem:[%s368] sm:$0xff]
      %655 = vset.pattern.permute.xlu0 0
      %656 = vperm.xlu0 %655, %v654
      %v657 = vpop.permute.xlu0 %656
      %vm658 = vcmp.eq.s32.totalorder %v657, %v403
      %v659 = vsel %vm658, 1, 0
      %v660 = vcvt.s32.f32 %v659
      %v661 = vld [vmem:[%s380] sm:$0xff]
      %662 = vset.pattern.permute.xlu0 0
      %663 = vperm.xlu0 %662, %v661
      %v664 = vpop.permute.xlu0 %663
      %vm665 = vcmp.eq.s32.totalorder %v664, %v403
      %v666 = vsel %vm665, 1, 0
      %v667 = vcvt.s32.f32 %v666
      %v669 = vsel %vm418, %v667, 0
      %671 = vmatprep.subr.mxu0 0.0
      %672 = vmatpush1.msra.mxu0 0.0
      %673 = vmatprep.subr.mxu0 0.0
      %674 = vmatpush1.msra.mxu0 0.0
      %675 = vmatprep.subr.mxu0 0.0
      %676 = vmatpush1.msra.mxu0 0.0
      %677 = vmatprep.subr.mxu0 0.0
      %678 = vmatpush1.msra.mxu0 0.0
      %679 = vmatprep.subr.mxu0 0.0
      %680 = vmatpush1.msra.mxu0 0.0
      %681 = vmatprep.subr.mxu0 0.0
      %682 = vmatpush1.msra.mxu0 0.0
      %683 = vmatprep.subr.mxu0 0.0
      %684 = vmatpush1.msra.mxu0 0.0
      %685 = vmatprep.subr.mxu0 0.0
      %686 = vmatpush1.msra.mxu0 0.0
      %687 = vmatprep.subr.mxu0 0.0
      %688 = vmatpush1.msra.mxu0 0.0
      %689 = vmatprep.subr.mxu0 0.0
      %690 = vmatpush1.msra.mxu0 0.0
      %691 = vmatprep.subr.mxu0 0.0
      %692 = vmatpush1.msra.mxu0 0.0
      %693 = vmatprep.subr.mxu0 0.0
      %694 = vmatpush1.msra.mxu0 0.0
      %695 = vmatprep.subr.mxu0 0.0
      %696 = vmatpush1.msra.mxu0 0.0
      %697 = vmatprep.subr.mxu0 0.0
      %698 = vmatpush1.msra.mxu0 0.0
      %699 = vmatprep.subr.mxu0 0.0
      %700 = vmatpush1.msra.mxu0 %v424
      %701 = vmatprep.subr.mxu0 0.0
      %702 = vmatpush1.msra.mxu0 %v400
      %703 = vmatprep.subr.mxu0 0.0
      %704 = vmatpush2.msra.mxu0 0.0
      %705 = vmatprep.subr.mxu0 0.0
      %706 = vmatpush2.msra.mxu0 0.0
      %707 = vmatprep.subr.mxu0 0.0
      %708 = vmatpush2.msra.mxu0 0.0
      %709 = vmatprep.subr.mxu0 0.0
      %710 = vmatpush2.msra.mxu0 0.0
      %711 = vmatprep.subr.mxu0 0.0
      %712 = vmatpush2.msra.mxu0 0.0
      %713 = vmatprep.subr.mxu0 0.0
      %714 = vmatpush2.msra.mxu0 0.0
      %715 = vmatprep.subr.mxu0 0.0
      %716 = vmatpush2.msra.mxu0 0.0
      %717 = vmatprep.subr.mxu0 0.0
      %718 = vmatpush2.msra.mxu0 0.0
      %719 = vmatprep.subr.mxu0 0.0
      %720 = vmatpush2.msra.mxu0 0.0
      %721 = vmatprep.subr.mxu0 0.0
      %722 = vmatpush2.msra.mxu0 0.0
      %723 = vmatprep.subr.mxu0 0.0
      %724 = vmatpush2.msra.mxu0 0.0
      %725 = vmatprep.subr.mxu0 0.0
      %726 = vmatpush2.msra.mxu0 0.0
      %727 = vmatprep.subr.mxu0 0.0
      %728 = vmatpush2.msra.mxu0 0.0
      %729 = vmatprep.subr.mxu0 0.0
      %730 = vmatpush2.msra.mxu0 0.0
      %731 = vmatprep.subr.mxu0 0.0
      %732 = vmatpush2.msra.mxu0 0.0
      %733 = vmatprep.subr.mxu0 0.0
      %734 = vmatpush2.msra.mxu0 0.0
      %735 = vmatprep.mubr.f32.mxu0 0.0
      %736 = vmatmul.mubr.f32.gmra.mxu0 %v669
      %v737 = vpop.f32.mrf.mxu0
      %v738 = vadd.f32 0.0, %v737
      %v739 = vpop.f32.mrf.mxu0
      %740 = vdwg.mxu0
      %v742 = vsel %vm496, %v660, 0
      %744 = vmatprep.subr.mxu0 0.0
      %745 = vmatpush1.msra.mxu0 0.0
      %746 = vmatprep.subr.mxu0 0.0
      %747 = vmatpush1.msra.mxu0 0.0
      %748 = vmatprep.subr.mxu0 0.0
      %749 = vmatpush1.msra.mxu0 0.0
      %750 = vmatprep.subr.mxu0 0.0
      %751 = vmatpush1.msra.mxu0 0.0
      %752 = vmatprep.subr.mxu0 0.0
      %753 = vmatpush1.msra.mxu0 0.0
      %754 = vmatprep.subr.mxu0 0.0
      %755 = vmatpush1.msra.mxu0 0.0
      %756 = vmatprep.subr.mxu0 0.0
      %757 = vmatpush1.msra.mxu0 0.0
      %758 = vmatprep.subr.mxu0 0.0
      %759 = vmatpush1.msra.mxu0 0.0
      %760 = vmatprep.subr.mxu0 0.0
      %761 = vmatpush1.msra.mxu0 0.0
      %762 = vmatprep.subr.mxu0 0.0
      %763 = vmatpush1.msra.mxu0 %v501
      %764 = vmatprep.subr.mxu0 0.0
      %765 = vmatpush1.msra.mxu0 %v396
      %766 = vmatprep.subr.mxu0 0.0
      %767 = vmatpush1.msra.mxu0 %v395
      %768 = vmatprep.subr.mxu0 0.0
      %769 = vmatpush1.msra.mxu0 %v394
      %770 = vmatprep.subr.mxu0 0.0
      %771 = vmatpush1.msra.mxu0 %v393
      %772 = vmatprep.subr.mxu0 0.0
      %773 = vmatpush1.msra.mxu0 %v392
      %774 = vmatprep.subr.mxu0 0.0
      %775 = vmatpush1.msra.mxu0 %v391
      %776 = vmatprep.subr.mxu0 0.0
      %777 = vmatpush2.msra.mxu0 0.0
      %778 = vmatprep.subr.mxu0 0.0
      %779 = vmatpush2.msra.mxu0 0.0
      %780 = vmatprep.subr.mxu0 0.0
      %781 = vmatpush2.msra.mxu0 0.0
      %782 = vmatprep.subr.mxu0 0.0
      %783 = vmatpush2.msra.mxu0 0.0
      %784 = vmatprep.subr.mxu0 0.0
      %785 = vmatpush2.msra.mxu0 0.0
      %786 = vmatprep.subr.mxu0 0.0
      %787 = vmatpush2.msra.mxu0 0.0
      %788 = vmatprep.subr.mxu0 0.0
      %789 = vmatpush2.msra.mxu0 0.0
      %790 = vmatprep.subr.mxu0 0.0
      %791 = vmatpush2.msra.mxu0 0.0
      %792 = vmatprep.subr.mxu0 0.0
      %793 = vmatpush2.msra.mxu0 0.0
      %794 = vmatprep.subr.mxu0 0.0
      %795 = vmatpush2.msra.mxu0 0.0
      %796 = vmatprep.subr.mxu0 0.0
      %797 = vmatpush2.msra.mxu0 0.0
      %798 = vmatprep.subr.mxu0 0.0
      %799 = vmatpush2.msra.mxu0 0.0
      %800 = vmatprep.subr.mxu0 0.0
      %801 = vmatpush2.msra.mxu0 0.0
      %802 = vmatprep.subr.mxu0 0.0
      %803 = vmatpush2.msra.mxu0 0.0
      %804 = vmatprep.subr.mxu0 0.0
      %805 = vmatpush2.msra.mxu0 0.0
      %806 = vmatprep.subr.mxu0 0.0
      %807 = vmatpush2.msra.mxu0 0.0
      %808 = vmatprep.mubr.f32.mxu0 0.0
      %809 = vmatmul.mubr.f32.gmra.mxu0 %v742
      %v810 = vpop.f32.mrf.mxu0
      %v811 = vadd.f32 %v738, %v810
      %v812 = vpop.f32.mrf.mxu0
      %813 = vdwg.mxu0
      %v814 = vld [vmem:[%s372] sm:$0xff]
      %815 = vset.pattern.permute.xlu0 0
      %816 = vperm.xlu0 %815, %v814
      %v817 = vpop.permute.xlu0 %816
      %vm818 = vcmp.eq.s32.totalorder %v817, %v403
      %v819 = vsel %vm818, 1, 0
      %v820 = vcvt.s32.f32 %v819
      %v822 = vsel %vm496, %v820, 0
      %824 = vmatprep.subr.mxu0 0.0
      %825 = vmatpush1.msra.mxu0 0.0
      %826 = vmatprep.subr.mxu0 0.0
      %827 = vmatpush1.msra.mxu0 0.0
      %828 = vmatprep.subr.mxu0 0.0
      %829 = vmatpush1.msra.mxu0 0.0
      %830 = vmatprep.subr.mxu0 0.0
      %831 = vmatpush1.msra.mxu0 0.0
      %832 = vmatprep.subr.mxu0 0.0
      %833 = vmatpush1.msra.mxu0 0.0
      %834 = vmatprep.subr.mxu0 0.0
      %835 = vmatpush1.msra.mxu0 0.0
      %836 = vmatprep.subr.mxu0 0.0
      %837 = vmatpush1.msra.mxu0 0.0
      %838 = vmatprep.subr.mxu0 0.0
      %839 = vmatpush1.msra.mxu0 0.0
      %840 = vmatprep.subr.mxu0 0.0
      %841 = vmatpush1.msra.mxu0 0.0
      %842 = vmatprep.subr.mxu0 0.0
      %843 = vmatpush1.msra.mxu0 %v501
      %844 = vmatprep.subr.mxu0 0.0
      %845 = vmatpush1.msra.mxu0 %v396
      %846 = vmatprep.subr.mxu0 0.0
      %847 = vmatpush1.msra.mxu0 %v395
      %848 = vmatprep.subr.mxu0 0.0
      %849 = vmatpush1.msra.mxu0 %v394
      %850 = vmatprep.subr.mxu0 0.0
      %851 = vmatpush1.msra.mxu0 %v393
      %852 = vmatprep.subr.mxu0 0.0
      %853 = vmatpush1.msra.mxu0 %v392
      %854 = vmatprep.subr.mxu0 0.0
      %855 = vmatpush1.msra.mxu0 %v391
      %856 = vmatprep.subr.mxu0 0.0
      %857 = vmatpush2.msra.mxu0 0.0
      %858 = vmatprep.subr.mxu0 0.0
      %859 = vmatpush2.msra.mxu0 0.0
      %860 = vmatprep.subr.mxu0 0.0
      %861 = vmatpush2.msra.mxu0 0.0
      %862 = vmatprep.subr.mxu0 0.0
      %863 = vmatpush2.msra.mxu0 0.0
      %864 = vmatprep.subr.mxu0 0.0
      %865 = vmatpush2.msra.mxu0 0.0
      %866 = vmatprep.subr.mxu0 0.0
      %867 = vmatpush2.msra.mxu0 0.0
      %868 = vmatprep.subr.mxu0 0.0
      %869 = vmatpush2.msra.mxu0 0.0
      %870 = vmatprep.subr.mxu0 0.0
      %871 = vmatpush2.msra.mxu0 0.0
      %872 = vmatprep.subr.mxu0 0.0
      %873 = vmatpush2.msra.mxu0 0.0
      %874 = vmatprep.subr.mxu0 0.0
      %875 = vmatpush2.msra.mxu0 0.0
      %876 = vmatprep.subr.mxu0 0.0
      %877 = vmatpush2.msra.mxu0 0.0
      %878 = vmatprep.subr.mxu0 0.0
      %879 = vmatpush2.msra.mxu0 0.0
      %880 = vmatprep.subr.mxu0 0.0
      %881 = vmatpush2.msra.mxu0 0.0
      %882 = vmatprep.subr.mxu0 0.0
      %883 = vmatpush2.msra.mxu0 0.0
      %884 = vmatprep.subr.mxu0 0.0
      %885 = vmatpush2.msra.mxu0 0.0
      %886 = vmatprep.subr.mxu0 0.0
      %887 = vmatpush2.msra.mxu0 0.0
      %888 = vmatprep.mubr.f32.mxu0 0.0
      %889 = vmatmul.mubr.f32.gmra.mxu0 %v822
      %v890 = vpop.f32.mrf.mxu0
      %v891 = vadd.f32 0.0, %v890
      %v892 = vpop.f32.mrf.mxu0
      %893 = vdwg.mxu0
      %v894 = vsub.f32 %v811, %v891
      %v895 = vmul.f32 %v653, %v653
      %896 = vadd.xlane.f32.xlu0 %v895
      %v897 = vpop.xlane.xlu0 %896
      %v898 = vrsqrt.pop %v897
      %v899 = vmul.f32 %v897, %v898
      %vm900 = vcmp.eq.f32.partialorder %v897, inf
      %v901 = vsel %vm900, %v897, %v899
      %vm902 = vcmp.eq.f32.partialorder %v897, 0.0
      %v903 = vand.u32 %v897, 2147483648
      %v904 = vsel %vm902, %v903, %v901
      %v905 = vmul.f32 %v894, %v894
      %906 = vadd.xlane.f32.xlu0 %v905
      %v907 = vpop.xlane.xlu0 %906
      %v908 = vrsqrt.pop %v907
      %v909 = vmul.f32 %v907, %v908
      %vm910 = vcmp.eq.f32.partialorder %v907, inf
      %v911 = vsel %vm910, %v907, %v909
      %vm912 = vcmp.eq.f32.partialorder %v907, 0.0
      %v913 = vand.u32 %v907, 2147483648
      %v914 = vsel %vm912, %v913, %v911
      %v915 = vadd.f32 %v904, 1.0
      %v916 = vsub.f32 %v915, %v914
      %v917 = vmax.f32 %v916, 0.0
      %s918 = smul.u32 %s19, 8
      %v919 = vlaneseq
      %v920 = vshrl.u32 %v919, 7
      %v921 = vstv %s918
      %v922 = vadd.s32 %v921, %v920
      %vm923 = vcmp.lt.s32.totalorder %v922, 24
      %v924 = vsel %vm923, %v917, 0.0
      %v925 = vrot.slane %v924, 4
      %v926 = vadd.f32 %v924, %v925
      %v927 = vrot.slane %v926, 2
      %v928 = vadd.f32 %v926, %v927
      %v929 = vrot.slane %v928, 1
      %v930 = vadd.f32 %v928, %v929
      %vm931 = vcmask 0
      %932 = vst.msk [vmem:[%s383] sm:$0x1] %vm931, %v930
      %p933 = scmp.lt.s32.totalorder %s19, 2
      %s934 = scalar_select %p933, %s19, 2
      %s935 = scalar_lea.vmem %s8, %s934
      // Predicated region
      $region53: #{tpu_custom_call.1} parent=51 // pred_check
        %p936 = pneg %p235
      $region54: #{tpu_custom_call.1} parent=51 // pred_check_branch
        %938 = sbr.rel (%p936) target = $region56
      $region55: #{tpu_custom_call.1} parent=51 // pred_region
        _
      $region56: #{tpu_custom_call.1} parent=51 // pred_fallthru
        _
    $region52: #{tpu_custom_call.1} parent=5 // pred_fallthru
      _
    %p939 = scmp.le.s32.totalorder 2, %s14
    // Predicated region
    $region57: #{tpu_custom_call.1} parent=5 // pred_check
      %p940 = pneg %p939
    $region58: #{tpu_custom_call.1} parent=5 // pred_check_branch
      %942 = sbr.rel (%p940) target = $region60
    $region59: #{tpu_custom_call.1} parent=5 // pred_region
      %s943 = ssub.s32 %s14, 2
      // Predicated region
      $region61: #{tpu_custom_call.1} parent=59 // pred_check
        %p944 = pneg %p241
      $region62: #{tpu_custom_call.1} parent=59 // pred_check_branch
        %946 = sbr.rel (%p944) target = $region64
      $region63: #{tpu_custom_call.1} parent=59 // pred_region
        %p947 = scmp.lt.s32.totalorder %s20, 2
        %s948 = scalar_select %p947, %s20, 2
        %s949 = scalar_lea.vmem %s8, %s948
      $region64: #{tpu_custom_call.1} parent=59 // pred_fallthru
        _
    $region60: #{tpu_custom_call.1} parent=5 // pred_fallthru
      _
  $region6: #{tpu_custom_call.1} parent=0 // loop_footer
    %s18 = sadd.s32 1, %s14
  $region7: #{tpu_custom_call.1} parent=0 // loop_footer_branch
    %13 = sbr.rel target = $region3
  $region8: #{tpu_custom_call.1} parent=0 // loop_exit
    _

</llo_original>
